<compile_context>
chip_gen: v5e
topology: v5e:2x2
jax: 0.10.0
libtpu: 0.0.40
codegen_flags: <defaults>
</compile_context>

<pallas_src>
import numpy as np
import jax
import jax.numpy as jnp
from jax.experimental import pallas as pl
from jax.experimental.pallas import tpu as pltpu

_SUBLANE = 8


def _round_up(v, m):
    return ((v + m - 1) // m) * m


def _cdiv(a, b):
    return -(-a // b)


def _gen_params():
    """Generation-aware tiling targets: per-buffer tile bytes, VMEM clamp, min tiles."""
    kind = ""
    try:
        kind = jax.devices()[0].device_kind.lower()
    except Exception:
        pass
    if "v7" in kind or "7x" in kind:
        # v7x: ~3.2 TB/s HBM, 64 MiB VMEM/TC, 2 TCs -> bigger tiles, >=4 grid tiles.
        return {"tile_bytes": 12 << 20, "vmem_limit": 44 << 20, "min_tiles": 4}
    # v5e / v6e: DMA-bound, 128 MiB VMEM; 4-8 MiB tiles sit near the HBM roofline.
    return {"tile_bytes": 6 << 20, "vmem_limit": 32 << 20, "min_tiles": 2}


def _ldam_kernel(s_ref, t_ref, x_ref, m_ref, out_ref):
    """One batch tile of LDAM cross entropy -> per-example losses.

    s_ref  : (1, 1)  f32 in SMEM   scale factor s
    t_ref  : (TB, 1) i32           raw labels (pre-doubling)
    x_ref  : (TB, C) f32 / bf16    logits (full, unpadded class axis)
    m_ref  : (1, C)  f32           per-class margins
    out_ref: (TB, 1) f32           per-example loss
    """
    x = x_ref[...].astype(jnp.float32)                 # upcast if bf16 in HBM
    m = m_ref[...]                                     # (1, C)
    s = s_ref[0, 0]
    t2 = t_ref[...] * 2                                # reference: target * 2

    col = jax.lax.broadcasted_iota(jnp.int32, x.shape, 1)
    pred = col == t2                                   # boolean one-hot (replaces scatter_)

    # Margin applied only on the target column; selects keep VALU work minimal
    # (no f32 one-hot materialization, no extra multiplies).
    scaled = s * jnp.where(pred, x - m, x)             # (TB, C)

    # Hard-label cross entropy via stable log-sum-exp (f32 throughout).
    row_max = jnp.max(scaled, axis=-1, keepdims=True)              # XLU reduce
    sumexp = jnp.sum(jnp.exp(scaled - row_max), axis=-1, keepdims=True)
    lse = row_max + jnp.log(sumexp)                                # (TB, 1)
    tgt = jnp.sum(jnp.where(pred, scaled, 0.0), axis=-1, keepdims=True)

    out_ref[...] = lse - tgt                                       # (TB, 1)


def ldam_loss_pallas(x, target, m_list, s=30.0):
    """x: (B, C) f32/bf16, target: (B, 1) int, m_list: (1, C) f32 -> scalar f32 loss."""
    B, C = x.shape
    p = _gen_params()
    itemsize = jnp.dtype(x.dtype).itemsize

    # Rows per tile from a byte budget on the logits (the only large stream), capped
    # so the "parallel" grid has at least `min_tiles` tiles when the batch allows it.
    tb = max(1, p["tile_bytes"] // max(C * itemsize, 1))
    tb = min(tb, max(_SUBLANE, _cdiv(B, p["min_tiles"])))
    tb = max(_SUBLANE, (tb // _SUBLANE) * _SUBLANE)
    tb = min(tb, _round_up(B, _SUBLANE))               # don't over-size for tiny batches
    n_tiles = _cdiv(B, tb)                             # ragged tail -> bounded edge block

    m_p = m_list.astype(jnp.float32).reshape(1, C)     # tiny
    t_p = target.reshape(B, 1).astype(jnp.int32)       # tiny
    s_arr = jnp.full((1, 1), s, dtype=jnp.float32)

    # Scoped VMEM: double-buffered x tiles dominate; clamp per generation.
    est = 2 * tb * C * itemsize + 4 * tb * 4 + 2 * C * 4 + (2 << 20)
    vmem_limit = int(min(max(est, 16 << 20), p["vmem_limit"]))

    per_example = pl.pallas_call(
        _ldam_kernel,
        out_shape=jax.ShapeDtypeStruct((B, 1), jnp.float32),
        grid=(n_tiles,),
        in_specs=[
            pl.BlockSpec(memory_space=pltpu.MemorySpace.SMEM),    # s (scalar)
            pl.BlockSpec((tb, 1), lambda i: (i, 0)),              # target
            pl.BlockSpec((tb, C), lambda i: (i, 0)),              # x (full class axis)
            pl.BlockSpec((1, C), lambda i: (0, 0)),               # m_list
        ],
        out_specs=pl.BlockSpec((tb, 1), lambda i: (i, 0)),        # per-example loss
        compiler_params=pltpu.CompilerParams(
            dimension_semantics=("parallel",),
            vmem_limit_bytes=vmem_limit,
        ),
    )(s_arr, t_p, x, m_p)

    # Final mean over the batch in plain JAX (keeps the grid axis "parallel").
    return jnp.mean(per_example)


def ldam_loss_ref(x, target, m_list, s=30.0):
    """Plain-JAX reference for verification."""
    xf = x.astype(jnp.float32)
    t2 = (target.reshape(-1) * 2).astype(jnp.int32)
    onehot = jax.nn.one_hot(t2, x.shape[1], dtype=jnp.float32)
    batch_m = jnp.sum(onehot * m_list, axis=-1, keepdims=True)
    x_m = xf - batch_m
    output = jnp.where(onehot > 0, x_m, xf)
    scaled = s * output
    logp = jax.nn.log_softmax(scaled, axis=-1)
    return jnp.mean(-jnp.sum(logp * onehot, axis=-1))


def make_m_list(cls_counts, max_m=0.5):
    """Deterministic margin init mirroring LDAMLoss.__init__ for one task."""
    li = np.asarray([int(v) for v in cls_counts], dtype=np.float64)
    m = 1.0 / np.sqrt(np.sqrt(li))
    m = m * (max_m / np.max(m))
    return jnp.asarray(m, dtype=jnp.float32)[None, :]   # (1, C)


if __name__ == "__main__":
    C = 16
    s = 30.0

    # Deterministic "cls_num_list" (one task, C classes) -> per-class margins.
    cls_counts = [10 * (k + 1) for k in range(C)]        # [10, 20, ..., 160]
    m_list = make_m_list(cls_counts, max_m=0.5)          # (1, C)

    key = jax.random.PRNGKey(0)
    # B=8: exact tile; B=13: exercises the ragged (non-tile-multiple) batch tail.
    for B in (8, 13):
        key, kx, kt = jax.random.split(key, 3)
        x = jax.random.normal(kx, (B, C), dtype=jnp.float32)
        # raw labels in [0, C//2) so that the doubled labels stay in range [0, C)
        target = jax.random.randint(kt, (B, 1), 0, C // 2, dtype=jnp.int32)

        loss = jax.block_until_ready(ldam_loss_pallas(x, target, m_list, s=s))
        ref = jax.block_until_ready(ldam_loss_ref(x, target, m_list, s=s))

        assert np.isfinite(float(loss)), (B, float(loss))
        assert abs(float(loss) - float(ref)) <= 1e-3 * max(1.0, abs(float(ref))), (
            B, float(loss), float(ref))

    print("KERNEL_OK")
</pallas_src>

<mosaic_0001>
module attributes {stable_mosaic.version = 11 : i64} {
  func.func @_ldam_kernel(%arg0: i32, %arg1: memref<1x1xf32, #tpu.memory_space<smem>>, %arg2: memref<8x1xi32, #tpu.memory_space<vmem>>, %arg3: memref<8x16xf32, #tpu.memory_space<vmem>>, %arg4: memref<1x16xf32, #tpu.memory_space<vmem>>, %arg5: memref<8x1xf32, #tpu.memory_space<vmem>>) attributes {dimension_semantics = [#tpu.dimension_semantics<parallel>], iteration_bounds = array<i64: 1>, scalar_prefetch = 0 : i64, scratch_operands = 0 : i64, tpu.core_type = #tpu.core_type<tc>, window_params = [{transform_indices = @transform_0, window_bounds = array<i64: 1, 1>}, {transform_indices = @transform_1, window_bounds = array<i64: 8, 1>}, {transform_indices = @transform_2, window_bounds = array<i64: 8, 16>}, {pipeline_mode = #tpu.pipeline_mode<synchronous>, transform_indices = @transform_3, window_bounds = array<i64: 1, 16>}, {transform_indices = @transform_4, window_bounds = array<i64: 8, 1>}]} {
    %c0 = arith.constant 0 : index
    %c0_0 = arith.constant 0 : index
    %0 = vector.load %arg3[%c0, %c0_0] : memref<8x16xf32, #tpu.memory_space<vmem>>, vector<8x16xf32>
    %c0_1 = arith.constant 0 : index
    %c0_2 = arith.constant 0 : index
    %1 = vector.load %arg4[%c0_1, %c0_2] : memref<1x16xf32, #tpu.memory_space<vmem>>, vector<1x16xf32>
    %c0_3 = arith.constant 0 : index
    %c0_4 = arith.constant 0 : index
    %2 = memref.load %arg1[%c0_3, %c0_4] : memref<1x1xf32, #tpu.memory_space<smem>>
    %c0_5 = arith.constant 0 : index
    %c0_6 = arith.constant 0 : index
    %3 = vector.load %arg2[%c0_5, %c0_6] : memref<8x1xi32, #tpu.memory_space<vmem>>, vector<8x1xi32>
    %c2_i32 = arith.constant 2 : i32
    %4 = vector.broadcast %c2_i32 : i32 to vector<8x1xi32>
    %5 = arith.muli %3, %4 : vector<8x1xi32>
    %6 = tpu.iota {dimensions = array<i32: 1>} : vector<8x16xi32>
    %7 = vector.broadcast %5 : vector<8x1xi32> to vector<8x16xi32>
    %8 = arith.cmpi eq, %6, %7 : vector<8x16xi32>
    %9 = vector.broadcast %1 : vector<1x16xf32> to vector<8x16xf32>
    %10 = arith.subf %0, %9 : vector<8x16xf32>
    %11 = arith.select %8, %10, %0 : vector<8x16xi1>, vector<8x16xf32>
    %12 = vector.broadcast %2 : f32 to vector<8x16xf32>
    %13 = arith.mulf %12, %11 : vector<8x16xf32>
    %cst = arith.constant dense<0xFF800000> : vector<8xf32>
    %14 = vector.multi_reduction <maximumf>, %13, %cst [1] : vector<8x16xf32> to vector<8xf32>
    %15 = vector.shape_cast %14 : vector<8xf32> to vector<8x1xf32>
    %16 = vector.broadcast %15 : vector<8x1xf32> to vector<8x16xf32>
    %17 = arith.subf %13, %16 : vector<8x16xf32>
    %18 = math.exp %17 : vector<8x16xf32>
    %cst_7 = arith.constant dense<0.000000e+00> : vector<8xf32>
    %19 = vector.multi_reduction <add>, %18, %cst_7 [1] : vector<8x16xf32> to vector<8xf32>
    %20 = vector.shape_cast %19 : vector<8xf32> to vector<8x1xf32>
    %21 = math.log %20 : vector<8x1xf32>
    %22 = arith.addf %15, %21 : vector<8x1xf32>
    %cst_8 = arith.constant 0.000000e+00 : f32
    %23 = vector.broadcast %cst_8 : f32 to vector<8x16xf32>
    %24 = arith.select %8, %13, %23 : vector<8x16xi1>, vector<8x16xf32>
    %cst_9 = arith.constant dense<0.000000e+00> : vector<8xf32>
    %25 = vector.multi_reduction <add>, %24, %cst_9 [1] : vector<8x16xf32> to vector<8xf32>
    %26 = vector.shape_cast %25 : vector<8xf32> to vector<8x1xf32>
    %27 = arith.subf %22, %26 : vector<8x1xf32>
    %c0_10 = arith.constant 0 : index
    %c0_11 = arith.constant 0 : index
    %28 = vector.load %arg5[%c0_10, %c0_11] : memref<8x1xf32, #tpu.memory_space<vmem>>, vector<8x1xf32>
    tpu.vector_store %arg5[%c0_10, %c0_11], %27 {strides = array<i32>} : memref<8x1xf32, #tpu.memory_space<vmem>>, vector<8x1xf32>,
    return
  }
  func.func @transform_0(%arg0: i32) -> (i32, i32) {
    %c0_i32 = arith.constant 0 : i32
    %c0_i32_0 = arith.constant 0 : i32
    %c0_i32_1 = arith.constant 0 : i32
    return %c0_i32, %c0_i32_0 : i32, i32
  }
  func.func @transform_1(%arg0: i32) -> (i32, i32) {
    %c0_i32 = arith.constant 0 : i32
    %c0_i32_0 = arith.constant 0 : i32
    return %arg0, %c0_i32 : i32, i32
  }
  func.func @transform_2(%arg0: i32) -> (i32, i32) {
    %c0_i32 = arith.constant 0 : i32
    %c0_i32_0 = arith.constant 0 : i32
    return %arg0, %c0_i32 : i32, i32
  }
  func.func @transform_3(%arg0: i32) -> (i32, i32) {
    %c0_i32 = arith.constant 0 : i32
    %c0_i32_0 = arith.constant 0 : i32
    %c0_i32_1 = arith.constant 0 : i32
    return %c0_i32, %c0_i32_0 : i32, i32
  }
  func.func @transform_4(%arg0: i32) -> (i32, i32) {
    %c0_i32 = arith.constant 0 : i32
    %c0_i32_0 = arith.constant 0 : i32
    return %arg0, %c0_i32 : i32, i32
  }
}

</mosaic_0001>

<llo_original>
// kernel: tpu_custom_call.1
$region0: #{tpu_custom_call.1}
  #allocation0 [shape = 'u32[]', space=smem, size = 0x4, offset = 0x4, fixed_abs, tag = 'smem constant byte address 0x4 - core index']
  #allocation1 [shape = 'u32[72,128]{1,0:T(1,128)}', space=vmem, size = 0x9000, scoped, tag = 'internal scratch']
  #allocation2 [shape = 'f32[1,1]{1,0:T(1,128)S(6)}', space=smem, size = 0x200, scoped, tag = 'scoped memory for tpu_custom_call.1']
  %s0 = inlined_call_operand.<no memory space> [shape: f32[1,1], index: 0, kind: input, shape index: {}]
  %s1 = inlined_call_operand.vmem [shape: s32[8,1], index: 1, kind: input, shape index: {}]
  %s2 = inlined_call_operand.vmem [shape: f32[8,16], index: 2, kind: input, shape index: {}]
  %s3 = inlined_call_operand.vmem [shape: f32[1,16], index: 3, kind: input, shape index: {}]
  %s4 = inlined_call_operand.vmem [shape: f32[8,1], index: 4, kind: output, shape index: {}]
  %s5 = sld [smem:[#allocation0]]
  $region26: #{tpu_custom_call.1} parent=0
    _
  %s7 = ssub.s32 1, %s5
  %s8 = scalar_select 0, %s7, %s5
  %9 = sst [smem:[#allocation2]] %s0
  // Predicated region
  $region2: #{tpu_custom_call.1} parent=0 // pred_check
    _
  $region3: #{tpu_custom_call.1} parent=0 // pred_check_branch
    %11 = sbr.rel (0) target = $region5
  $region4: #{tpu_custom_call.1} parent=0 // pred_region
    _
  $region5: #{tpu_custom_call.1} parent=0 // pred_fallthru
    _
  // Predicated region
  $region6: #{tpu_custom_call.1} parent=0 // pred_check
    _
  $region7: #{tpu_custom_call.1} parent=0 // pred_check_branch
    %13 = sbr.rel (0) target = $region9
  $region8: #{tpu_custom_call.1} parent=0 // pred_region
    _
  $region9: #{tpu_custom_call.1} parent=0 // pred_fallthru
    _
  // Predicated region
  $region10: #{tpu_custom_call.1} parent=0 // pred_check
    _
  $region11: #{tpu_custom_call.1} parent=0 // pred_check_branch
    %15 = sbr.rel (0) target = $region13
  $region12: #{tpu_custom_call.1} parent=0 // pred_region
    _
  $region13: #{tpu_custom_call.1} parent=0 // pred_fallthru
    _
  // Predicated region
  $region14: #{tpu_custom_call.1} parent=0 // pred_check
    _
  $region15: #{tpu_custom_call.1} parent=0 // pred_check_branch
    %17 = sbr.rel (0) target = $region17
  $region16: #{tpu_custom_call.1} parent=0 // pred_region
    _
  $region17: #{tpu_custom_call.1} parent=0 // pred_fallthru
    _
  %v18 = vld [vmem:[%s2] sm:$0xff]
  %v19 = vld [vmem:[%s3] sm:$0x1]
  %s20 = sld [smem:[#allocation2]]
  %v21 = vld [vmem:[%s1] sm:$0xff]
  %v22 = vmul.u32 %v21, 2
  %v23 = vlaneseq
  %v24 = vand.u32 %v23, 127
  %25 = vset.pattern.permute.xlu0 0
  %26 = vperm.xlu0 %25, %v22
  %v27 = vpop.permute.xlu0 %26
  %vm28 = vcmp.eq.s32.totalorder %v24, %v27
  %v30 = vperm.slane %v19, 0
  %v32 = vsub.f32 %v18, %v30
  %v33 = vsel %vm28, %v32, %v18
  %v34 = vstv %s20
  %v35 = vmul.f32 %v34, %v33
  %vm36 = vcmask 130048
  %v37 = vsel %vm36, %v35, -inf
  %38 = vmax.xlane.f32.xlu0 %v37
  %v39 = vpop.xlane.xlu0 %38
  %v40 = vsub.f32 %v35, %v39
  %v41 = vmul.f32 %v40, 1.442695
  %v42 = vpow.pop %v41
  %v43 = vsel %vm36, %v42, 0.0
  %44 = vadd.xlane.f32.xlu0 %v43
  %v45 = vpop.xlane.xlu0 %44
  %v46 = vlog2.pop %v45
  %v47 = vmul.f32 %v46, 0.6931472
  %v48 = vadd.f32 %v39, %v47
  %v49 = vsel %vm28, %v35, 0.0
  %v50 = vsel %vm36, %v49, 0.0
  %51 = vadd.xlane.f32.xlu0 %v50
  %v52 = vpop.xlane.xlu0 %51
  %v53 = vsub.f32 %v48, %v52
  %vm54 = vcmask 7168
  %55 = vst.msk [vmem:[%s4] sm:$0xff] %vm54, %v53
  // Predicated region
  $region18: #{tpu_custom_call.1} parent=0 // pred_check
    _
  $region19: #{tpu_custom_call.1} parent=0 // pred_check_branch
    %57 = sbr.rel (0) target = $region21
  $region20: #{tpu_custom_call.1} parent=0 // pred_region
    _
  $region21: #{tpu_custom_call.1} parent=0 // pred_fallthru
    _
  // Predicated region
  $region22: #{tpu_custom_call.1} parent=0 // pred_check
    _
  $region23: #{tpu_custom_call.1} parent=0 // pred_check_branch
    %59 = sbr.rel (0) target = $region25
  $region24: #{tpu_custom_call.1} parent=0 // pred_region
    _
  $region25: #{tpu_custom_call.1} parent=0 // pred_fallthru
    _

</llo_original>
